<compile_context>
chip_gen: v7x
topology: tpu7x:2x2x1
jax: 0.10.0
libtpu: 0.0.40
codegen_flags: <defaults>
</compile_context>

<pallas_src>
import functools

import jax
import jax.numpy as jnp
from jax.experimental import pallas as pl
from jax.experimental.pallas import tpu as pltpu


def _value_net_kernel(obs_ref, w1_ref, b1_ref, w2_ref, b2_ref, w3_ref, b3_ref,
                      out_ref):
    """Fused 2-layer MLP + scalar value head, feature-major (batch in lanes)."""
    # In-kernel transpose (XLU) + cast (VPU): obs is read from HBM once as f32.
    x_t = obs_ref[...].T.astype(w1_ref.dtype)          # (obs_dim, TB)

    h1 = jnp.dot(w1_ref[...], x_t,
                 preferred_element_type=jnp.float32)    # (hidden, TB)
    h1 = jnp.maximum(h1 + b1_ref[...], 0.0)             # lane-dense bias+ReLU
    h1 = h1.astype(w2_ref.dtype)                         # MXU operand dtype

    h2 = jnp.dot(w2_ref[...], h1,
                 preferred_element_type=jnp.float32)    # (hidden, TB)
    h2 = jnp.maximum(h2 + b2_ref[...], 0.0)

    # Value head (N=1): multiply + sublane reduce (XLU), result already a
    # lane-dense (1, TB) row -> unmasked stores.
    v = jnp.sum(h2 * w3_ref[...], axis=0, keepdims=True) + b3_ref[...]
    out_ref[...] = v.astype(out_ref.dtype)


def prepare_params(params, *, use_bf16=True):
    """One-time weight prep (outside the hot forward path).

    Feature-major kernel consumes PyTorch's native (out, in) Linear layout
    directly, so no transposes are needed. MXU operands may be cast to bf16
    once (f32 accumulation keeps accuracy); biases and the value-head column
    stay f32 for the VPU/XLU epilogue.
    """
    mxu_dtype = jnp.bfloat16 if use_bf16 else jnp.float32
    return {
        "w1": params["w1"].astype(mxu_dtype),                      # (hid, obs)
        "w2": params["w2"].astype(mxu_dtype),                      # (hid, hid)
        "w3": params["w3"].reshape(-1, 1).astype(jnp.float32),     # (hid, 1)
        "b1": params["b1"].reshape(-1, 1).astype(jnp.float32),     # (hid, 1)
        "b2": params["b2"].reshape(-1, 1).astype(jnp.float32),     # (hid, 1)
        "b3": params["b3"].reshape(1, 1).astype(jnp.float32),      # (1, 1)
    }


def _round_up(x, m):
    return ((x + m - 1) // m) * m


def _choose_batch_tile(B, block_b):
    """Static (trace-time) batch-tile choice."""
    if B <= 256:
        # Single block covering the whole (small) batch: block dims equal the
        # full array dims, so it is legal regardless of (8,128) alignment.
        return B
    tb = min(block_b, _round_up(B, 128))            # lane-aligned tile
    if -(-B // tb) < 2:
        # Keep >= 2 grid steps when the batch allows it so v7x can shard the
        # "parallel" batch axis across both TensorCores.
        tb = max(128, _round_up(-(-B // 2), 128))
    return tb


@functools.partial(jax.jit, static_argnames=("block_b",))
def value_network_forward(obs, prepped, *, block_b=4096):
    """obs: [B, obs_dim] float32. prepped: output of prepare_params."""
    B, obs_dim = obs.shape
    tb = _choose_batch_tile(B, block_b)
    grid = -(-B // tb)                               # cdiv; boundary block masked

    def const2d(arr):
        # Weights/biases: same block every grid step -> stay VMEM-resident.
        return pl.BlockSpec(arr.shape, lambda i: (0, 0))

    out_row = pl.pallas_call(
        _value_net_kernel,
        out_shape=jax.ShapeDtypeStruct((1, B), jnp.float32),
        grid=(grid,),
        in_specs=[
            pl.BlockSpec((tb, obs_dim), lambda i: (i, 0)),   # f32 batch tile
            const2d(prepped["w1"]),
            const2d(prepped["b1"]),
            const2d(prepped["w2"]),
            const2d(prepped["b2"]),
            const2d(prepped["w3"]),
            const2d(prepped["b3"]),
        ],
        out_specs=pl.BlockSpec((1, tb), lambda i: (0, i)),   # lane-dense row
        compiler_params=pltpu.CompilerParams(
            dimension_semantics=("parallel",)),              # megacore on v7x
    )(obs, prepped["w1"], prepped["b1"], prepped["w2"], prepped["b2"],
      prepped["w3"], prepped["b3"])

    # (1, B) -> (B, 1): same linear order, trivial reshape.
    return out_row.reshape(B, 1)


def init_params(key, obs_dim, hidden_dim):
    """Deterministic synthetic init (PyTorch shape conventions: (out, in))."""
    ks = jax.random.split(key, 6)
    scale1 = 1.0 / jnp.sqrt(obs_dim)
    scale2 = 1.0 / jnp.sqrt(hidden_dim)
    return {
        "w1": jax.random.uniform(ks[0], (hidden_dim, obs_dim), jnp.float32,
                                 -scale1, scale1),
        "b1": jax.random.uniform(ks[1], (hidden_dim,), jnp.float32,
                                 -scale1, scale1),
        "w2": jax.random.uniform(ks[2], (hidden_dim, hidden_dim), jnp.float32,
                                 -scale2, scale2),
        "b2": jax.random.uniform(ks[3], (hidden_dim,), jnp.float32,
                                 -scale2, scale2),
        "w3": jax.random.uniform(ks[4], (1, hidden_dim), jnp.float32,
                                 -scale2, scale2),
        "b3": jax.random.uniform(ks[5], (1,), jnp.float32, -scale2, scale2),
    }


def _reference_forward(obs, params):
    h1 = jnp.maximum(obs @ params["w1"].T + params["b1"], 0.0)
    h2 = jnp.maximum(h1 @ params["w2"].T + params["b2"], 0.0)
    return h2 @ params["w3"].T + params["b3"]


if __name__ == "__main__":
    key = jax.random.PRNGKey(0)
    k_obs, k_params = jax.random.split(key)

    B, obs_dim, hidden_dim = 8, 16, 32
    obs = jax.random.normal(k_obs, (B, obs_dim), jnp.float32)
    params = init_params(k_params, obs_dim, hidden_dim)
    ref = _reference_forward(obs, params)

    # Exact path (f32 MXU operands): tight tolerance.
    out_f32 = value_network_forward(obs, prepare_params(params, use_bf16=False))
    out_f32 = jax.block_until_ready(out_f32)
    assert out_f32.shape == (B, 1), out_f32.shape
    assert jnp.allclose(out_f32, ref, atol=1e-4, rtol=1e-4), (out_f32, ref)

    # Default bf16-MXU path: f32 accumulation, loose tolerance vs f32 reference.
    # (Note: obs itself is cast to bf16 in-kernel; keep use_bf16=False if full
    # input mantissa matters.)
    out_bf16 = value_network_forward(obs, prepare_params(params, use_bf16=True))
    out_bf16 = jax.block_until_ready(out_bf16)
    assert out_bf16.shape == (B, 1), out_bf16.shape
    assert jnp.allclose(out_bf16, ref, atol=1e-1, rtol=1e-1), (out_bf16, ref)

    # Multi-tile, non-divisible batch: masked boundary block + 2-step parallel grid.
    B2 = 1000
    obs2 = jax.random.normal(jax.random.PRNGKey(1), (B2, obs_dim), jnp.float32)
    out2 = jax.block_until_ready(
        value_network_forward(obs2, prepare_params(params, use_bf16=False),
                              block_b=512))
    ref2 = _reference_forward(obs2, params)
    assert out2.shape == (B2, 1), out2.shape
    assert jnp.allclose(out2, ref2, atol=1e-4, rtol=1e-4)

    print("KERNEL_OK")
</pallas_src>

<mosaic_0001>
module attributes {stable_mosaic.version = 11 : i64} {
  func.func @_value_net_kernel(%arg0: i32, %arg1: memref<8x16xf32, #tpu.memory_space<vmem>>, %arg2: memref<32x16xf32, #tpu.memory_space<vmem>>, %arg3: memref<32x1xf32, #tpu.memory_space<vmem>>, %arg4: memref<32x32xf32, #tpu.memory_space<vmem>>, %arg5: memref<32x1xf32, #tpu.memory_space<vmem>>, %arg6: memref<32x1xf32, #tpu.memory_space<vmem>>, %arg7: memref<1x1xf32, #tpu.memory_space<vmem>>, %arg8: memref<1x8xf32, #tpu.memory_space<vmem>>) attributes {dimension_semantics = [#tpu.dimension_semantics<parallel>], iteration_bounds = array<i64: 1>, scalar_prefetch = 0 : i64, scratch_operands = 0 : i64, tpu.core_type = #tpu.core_type<tc>, window_params = [{transform_indices = @transform_0, window_bounds = array<i64: 8, 16>}, {pipeline_mode = #tpu.pipeline_mode<synchronous>, transform_indices = @transform_1, window_bounds = array<i64: 32, 16>}, {pipeline_mode = #tpu.pipeline_mode<synchronous>, transform_indices = @transform_2, window_bounds = array<i64: 32, 1>}, {pipeline_mode = #tpu.pipeline_mode<synchronous>, transform_indices = @transform_3, window_bounds = array<i64: 32, 32>}, {pipeline_mode = #tpu.pipeline_mode<synchronous>, transform_indices = @transform_4, window_bounds = array<i64: 32, 1>}, {pipeline_mode = #tpu.pipeline_mode<synchronous>, transform_indices = @transform_5, window_bounds = array<i64: 32, 1>}, {pipeline_mode = #tpu.pipeline_mode<synchronous>, transform_indices = @transform_6, window_bounds = array<i64: 1, 1>}, {transform_indices = @transform_7, window_bounds = array<i64: 1, 8>}]} {
    %c0 = arith.constant 0 : index
    %c0_0 = arith.constant 0 : index
    %0 = vector.load %arg1[%c0, %c0_0] : memref<8x16xf32, #tpu.memory_space<vmem>>, vector<8x16xf32>
    %1 = tpu.transpose %0, [1, 0] : vector<8x16xf32> -> vector<16x8xf32>
    %c0_1 = arith.constant 0 : index
    %c0_2 = arith.constant 0 : index
    %2 = vector.load %arg2[%c0_1, %c0_2] : memref<32x16xf32, #tpu.memory_space<vmem>>, vector<32x16xf32>
    %cst = arith.constant dense<0.000000e+00> : vector<32x8xf32>
    %3 = tpu.matmul %2, %1, %cst {dimension_numbers = #tpu.dot_dimension_numbers<[1], [0], [0], [1], [0, 0, 1, 1], [], []>} : vector<32x16xf32>, vector<16x8xf32>, vector<32x8xf32> -> vector<32x8xf32>
    %c0_3 = arith.constant 0 : index
    %c0_4 = arith.constant 0 : index
    %4 = vector.load %arg3[%c0_3, %c0_4] : memref<32x1xf32, #tpu.memory_space<vmem>>, vector<32x1xf32>
    %5 = vector.broadcast %4 : vector<32x1xf32> to vector<32x8xf32>
    %6 = arith.addf %3, %5 : vector<32x8xf32>
    %cst_5 = arith.constant 0.000000e+00 : f32
    %7 = vector.broadcast %cst_5 : f32 to vector<32x8xf32>
    %8 = arith.maximumf %6, %7 : vector<32x8xf32>
    %c0_6 = arith.constant 0 : index
    %c0_7 = arith.constant 0 : index
    %9 = vector.load %arg4[%c0_6, %c0_7] : memref<32x32xf32, #tpu.memory_space<vmem>>, vector<32x32xf32>
    %cst_8 = arith.constant dense<0.000000e+00> : vector<32x8xf32>
    %10 = tpu.matmul %9, %8, %cst_8 {dimension_numbers = #tpu.dot_dimension_numbers<[1], [0], [0], [1], [0, 0, 1, 1], [], []>} : vector<32x32xf32>, vector<32x8xf32>, vector<32x8xf32> -> vector<32x8xf32>
    %c0_9 = arith.constant 0 : index
    %c0_10 = arith.constant 0 : index
    %11 = vector.load %arg5[%c0_9, %c0_10] : memref<32x1xf32, #tpu.memory_space<vmem>>, vector<32x1xf32>
    %12 = vector.broadcast %11 : vector<32x1xf32> to vector<32x8xf32>
    %13 = arith.addf %10, %12 : vector<32x8xf32>
    %cst_11 = arith.constant 0.000000e+00 : f32
    %14 = vector.broadcast %cst_11 : f32 to vector<32x8xf32>
    %15 = arith.maximumf %13, %14 : vector<32x8xf32>
    %c0_12 = arith.constant 0 : index
    %c0_13 = arith.constant 0 : index
    %16 = vector.load %arg6[%c0_12, %c0_13] : memref<32x1xf32, #tpu.memory_space<vmem>>, vector<32x1xf32>
    %17 = vector.broadcast %16 : vector<32x1xf32> to vector<32x8xf32>
    %18 = arith.mulf %15, %17 : vector<32x8xf32>
    %cst_14 = arith.constant dense<0.000000e+00> : vector<8xf32>
    %19 = vector.multi_reduction <add>, %18, %cst_14 [0] : vector<32x8xf32> to vector<8xf32>
    %20 = vector.shape_cast %19 : vector<8xf32> to vector<1x8xf32>
    %c0_15 = arith.constant 0 : index
    %c0_16 = arith.constant 0 : index
    %21 = vector.load %arg7[%c0_15, %c0_16] : memref<1x1xf32, #tpu.memory_space<vmem>>, vector<1x1xf32>
    %22 = vector.broadcast %21 : vector<1x1xf32> to vector<1x8xf32>
    %23 = arith.addf %20, %22 : vector<1x8xf32>
    %c0_17 = arith.constant 0 : index
    %c0_18 = arith.constant 0 : index
    %24 = vector.load %arg8[%c0_17, %c0_18] : memref<1x8xf32, #tpu.memory_space<vmem>>, vector<1x8xf32>
    tpu.vector_store %arg8[%c0_17, %c0_18], %23 {strides = array<i32>} : memref<1x8xf32, #tpu.memory_space<vmem>>, vector<1x8xf32>,
    return
  }
  func.func @transform_0(%arg0: i32) -> (i32, i32) {
    %c0_i32 = arith.constant 0 : i32
    %c0_i32_0 = arith.constant 0 : i32
    return %arg0, %c0_i32 : i32, i32
  }
  func.func @transform_1(%arg0: i32) -> (i32, i32) {
    %c0_i32 = arith.constant 0 : i32
    %c0_i32_0 = arith.constant 0 : i32
    %c0_i32_1 = arith.constant 0 : i32
    return %c0_i32, %c0_i32_0 : i32, i32
  }
  func.func @transform_2(%arg0: i32) -> (i32, i32) {
    %c0_i32 = arith.constant 0 : i32
    %c0_i32_0 = arith.constant 0 : i32
    %c0_i32_1 = arith.constant 0 : i32
    return %c0_i32, %c0_i32_0 : i32, i32
  }
  func.func @transform_3(%arg0: i32) -> (i32, i32) {
    %c0_i32 = arith.constant 0 : i32
    %c0_i32_0 = arith.constant 0 : i32
    %c0_i32_1 = arith.constant 0 : i32
    return %c0_i32, %c0_i32_0 : i32, i32
  }
  func.func @transform_4(%arg0: i32) -> (i32, i32) {
    %c0_i32 = arith.constant 0 : i32
    %c0_i32_0 = arith.constant 0 : i32
    %c0_i32_1 = arith.constant 0 : i32
    return %c0_i32, %c0_i32_0 : i32, i32
  }
  func.func @transform_5(%arg0: i32) -> (i32, i32) {
    %c0_i32 = arith.constant 0 : i32
    %c0_i32_0 = arith.constant 0 : i32
    %c0_i32_1 = arith.constant 0 : i32
    return %c0_i32, %c0_i32_0 : i32, i32
  }
  func.func @transform_6(%arg0: i32) -> (i32, i32) {
    %c0_i32 = arith.constant 0 : i32
    %c0_i32_0 = arith.constant 0 : i32
    %c0_i32_1 = arith.constant 0 : i32
    return %c0_i32, %c0_i32_0 : i32, i32
  }
  func.func @transform_7(%arg0: i32) -> (i32, i32) {
    %c0_i32 = arith.constant 0 : i32
    %c0_i32_0 = arith.constant 0 : i32
    return %c0_i32, %arg0 : i32, i32
  }
}

</mosaic_0001>

<llo_original>
// kernel: value_network_forward.1
$region0: #{value_network_forward.1}
  #allocation0 [shape = 'u32[]', space=smem, size = 0x4, offset = 0x4, fixed_abs, tag = 'smem constant byte address 0x4 - core index']
  #allocation1 [shape = 'u32[144,128]{1,0:T(1,128)}', space=vmem, size = 0x12000, scoped, tag = 'internal scratch']
  #allocation2 [shape = 'f32[1,1]{1,0:T(1,128)S(1)}', space=vmem, size = 0x200, scoped, tag = 'scoped memory for value_network_forward.1']
  %s0 = inlined_call_operand.vmem [shape: f32[8,16], index: 0, kind: input, shape index: {}]
  %s1 = inlined_call_operand.vmem [shape: f32[32,16], index: 1, kind: input, shape index: {}]
  %s2 = inlined_call_operand.vmem [shape: f32[32,1], index: 2, kind: input, shape index: {}]
  %s3 = inlined_call_operand.vmem [shape: f32[32,32], index: 3, kind: input, shape index: {}]
  %s4 = inlined_call_operand.vmem [shape: f32[32,1], index: 4, kind: input, shape index: {}]
  %s5 = inlined_call_operand.vmem [shape: f32[32,1], index: 5, kind: input, shape index: {}]
  %s6 = inlined_call_operand.<no memory space> [shape: f32[1,1], index: 6, kind: input, shape index: {}]
  %s7 = inlined_call_operand.hbm [shape: f32[1,8], index: 7, kind: output, shape index: {}]
  %s8 = sld [smem:[#allocation0]]
  $region38: #{value_network_forward.1} parent=0
    _
  %s10 = ssub.s32 1, %s8
  %s11 = scalar_select 0, %s10, %s8
  %v12 = vstv %s6
  %13 = vst [vmem:[#allocation2] sm:$0x1] %v12
  $region1: #{value_network_forward.1} parent=0
    #allocation3 [shape = 'u8[512]{0}', space=vmem, size = 0x400, scoped, tag = 'output window, operand 0, single buffered']
    #allocation4 [shape = 's32[1]{0}', space=sflag, size = 0x4, scoped, tag = 'scoped memory for value_network_forward.1']
    %14 = vsyncpa [#allocation4], 0
    // Predicated region
    $region2: #{value_network_forward.1} parent=1 // pred_check
      _
    $region3: #{value_network_forward.1} parent=1 // pred_check_branch
      %16 = sbr.rel (0) target = $region5
    $region4: #{value_network_forward.1} parent=1 // pred_region
      _
    $region5: #{value_network_forward.1} parent=1 // pred_fallthru
      _
    // Predicated region
    $region6: #{value_network_forward.1} parent=1 // pred_check
      _
    $region7: #{value_network_forward.1} parent=1 // pred_check_branch
      %18 = sbr.rel (0) target = $region9
    $region8: #{value_network_forward.1} parent=1 // pred_region
      _
    $region9: #{value_network_forward.1} parent=1 // pred_fallthru
      _
    // Predicated region
    $region10: #{value_network_forward.1} parent=1 // pred_check
      _
    $region11: #{value_network_forward.1} parent=1 // pred_check_branch
      %20 = sbr.rel (0) target = $region13
    $region12: #{value_network_forward.1} parent=1 // pred_region
      _
    $region13: #{value_network_forward.1} parent=1 // pred_fallthru
      _
    // Predicated region
    $region14: #{value_network_forward.1} parent=1 // pred_check
      _
    $region15: #{value_network_forward.1} parent=1 // pred_check_branch
      %22 = sbr.rel (0) target = $region17
    $region16: #{value_network_forward.1} parent=1 // pred_region
      _
    $region17: #{value_network_forward.1} parent=1 // pred_fallthru
      _
    // Predicated region
    $region18: #{value_network_forward.1} parent=1 // pred_check
      _
    $region19: #{value_network_forward.1} parent=1 // pred_check_branch
      %24 = sbr.rel (0) target = $region21
    $region20: #{value_network_forward.1} parent=1 // pred_region
      _
    $region21: #{value_network_forward.1} parent=1 // pred_fallthru
      _
    // Predicated region
    $region22: #{value_network_forward.1} parent=1 // pred_check
      _
    $region23: #{value_network_forward.1} parent=1 // pred_check_branch
      %26 = sbr.rel (0) target = $region25
    $region24: #{value_network_forward.1} parent=1 // pred_region
      _
    $region25: #{value_network_forward.1} parent=1 // pred_fallthru
      _
    // Predicated region
    $region26: #{value_network_forward.1} parent=1 // pred_check
      _
    $region27: #{value_network_forward.1} parent=1 // pred_check_branch
      %28 = sbr.rel (0) target = $region29
    $region28: #{value_network_forward.1} parent=1 // pred_region
      _
    $region29: #{value_network_forward.1} parent=1 // pred_fallthru
      _
    %v29 = vld [vmem:[%s0] sm:$0xff]
    %v30 = vld [vmem:[%s1] sm:$0xff]
    %v31 = vld [vmem:[%s1 + $0x8] sm:$0xff]
    %v32 = vld [vmem:[%s1 + $0x10] sm:$0xff]
    %v33 = vld [vmem:[%s1 + $0x18] sm:$0xff]
    %v34 = vld [vmem:[%s2] sm:$0xff]
    %v35 = vld [vmem:[%s2 + $0x8] sm:$0xff]
    %v36 = vld [vmem:[%s2 + $0x10] sm:$0xff]
    %v37 = vld [vmem:[%s2 + $0x18] sm:$0xff]
    %39 = vset.pattern.permute.xlu0 0
    %40 = vperm.xlu0 %39, %v34
    %v41 = vpop.permute.xlu0 %40
    %44 = vset.pattern.permute.xlu0 0
    %45 = vperm.xlu0 %44, %v35
    %v46 = vpop.permute.xlu0 %45
    %49 = vset.pattern.permute.xlu0 0
    %50 = vperm.xlu0 %49, %v36
    %v51 = vpop.permute.xlu0 %50
    %54 = vset.pattern.permute.xlu0 0
    %55 = vperm.xlu0 %54, %v37
    %v56 = vpop.permute.xlu0 %55
    %vm58 = vcmask 130048
    %v60 = vsel %vm58, %v30, 0
    %v63 = vsel %vm58, %v31, 0
    %v66 = vsel %vm58, %v32, 0
    %v69 = vsel %vm58, %v33, 0
    %v72 = vsel %vm58, %v29, 0
    %74 = vmatprep.subr.mxu0 0.0
    %75 = vmatpush1.xpose.msra.mxu0 %v72
    %76 = vmatprep.subr.mxu0 0.0
    %77 = vmatpush1.xpose.msra.mxu0 0.0
    %78 = vmatprep.subr.mxu0 0.0
    %79 = vmatpush1.xpose.msra.mxu0 0.0
    %80 = vmatprep.subr.mxu0 0.0
    %81 = vmatpush1.xpose.msra.mxu0 0.0
    %82 = vmatprep.subr.mxu0 0.0
    %83 = vmatpush1.xpose.msra.mxu0 0.0
    %84 = vmatprep.subr.mxu0 0.0
    %85 = vmatpush1.xpose.msra.mxu0 0.0
    %86 = vmatprep.subr.mxu0 0.0
    %87 = vmatpush1.xpose.msra.mxu0 0.0
    %88 = vmatprep.subr.mxu0 0.0
    %89 = vmatpush1.xpose.msra.mxu0 0.0
    %90 = vmatprep.subr.mxu0 0.0
    %91 = vmatpush1.xpose.msra.mxu0 0.0
    %92 = vmatprep.subr.mxu0 0.0
    %93 = vmatpush1.xpose.msra.mxu0 0.0
    %94 = vmatprep.subr.mxu0 0.0
    %95 = vmatpush1.xpose.msra.mxu0 0.0
    %96 = vmatprep.subr.mxu0 0.0
    %97 = vmatpush1.xpose.msra.mxu0 0.0
    %98 = vmatprep.subr.mxu0 0.0
    %99 = vmatpush1.xpose.msra.mxu0 0.0
    %100 = vmatprep.subr.mxu0 0.0
    %101 = vmatpush1.xpose.msra.mxu0 0.0
    %102 = vmatprep.subr.mxu0 0.0
    %103 = vmatpush1.xpose.msra.mxu0 0.0
    %104 = vmatprep.subr.mxu0 0.0
    %105 = vmatpush1.xpose.msra.mxu0 0.0
    %106 = vmatprep.subr.mxu0 0.0
    %107 = vmatpush1.xpose.msra.mxu0 0.0
    %108 = vmatprep.subr.mxu0 0.0
    %109 = vmatpush1.xpose.msra.mxu0 0.0
    %110 = vmatprep.subr.mxu0 0.0
    %111 = vmatpush1.xpose.msra.mxu0 0.0
    %112 = vmatprep.subr.mxu0 0.0
    %113 = vmatpush1.xpose.msra.mxu0 0.0
    %114 = vmatprep.subr.mxu0 0.0
    %115 = vmatpush1.xpose.msra.mxu0 0.0
    %116 = vmatprep.subr.mxu0 0.0
    %117 = vmatpush1.xpose.msra.mxu0 0.0
    %118 = vmatprep.subr.mxu0 0.0
    %119 = vmatpush1.xpose.msra.mxu0 0.0
    %120 = vmatprep.subr.mxu0 0.0
    %121 = vmatpush1.xpose.msra.mxu0 0.0
    %122 = vmatprep.subr.mxu0 0.0
    %123 = vmatpush1.xpose.msra.mxu0 0.0
    %124 = vmatprep.subr.mxu0 0.0
    %125 = vmatpush1.xpose.msra.mxu0 0.0
    %126 = vmatprep.subr.mxu0 0.0
    %127 = vmatpush1.xpose.msra.mxu0 0.0
    %128 = vmatprep.subr.mxu0 0.0
    %129 = vmatpush1.xpose.msra.mxu0 0.0
    %130 = vmatprep.subr.mxu0 0.0
    %131 = vmatpush1.xpose.msra.mxu0 0.0
    %132 = vmatprep.subr.mxu0 0.0
    %133 = vmatpush1.xpose.msra.mxu0 0.0
    %134 = vmatprep.subr.mxu0 0.0
    %135 = vmatpush1.xpose.msra.mxu0 0.0
    %136 = vmatprep.subr.mxu0 0.0
    %137 = vmatpush1.xpose.msra.mxu0 0.0
    %138 = vmatprep.mubr.f32.mxu0 0.0
    %139 = vmatmul.mubr.f32.gmra.mrb[0].mxu0 %v60
    %v140 = vpop.f32.mrb[0].mxu0
    %v141 = vadd.f32 %v41, %v140
    %v142 = vpop.f32.mrb[0].mxu0
    %143 = vmatprep.mubr.f32.mxu0 0.0
    %144 = vmatmul.mubr.f32.gmra.mrb[0].mxu0 %v63
    %v145 = vpop.f32.mrb[0].mxu0
    %v146 = vadd.f32 %v46, %v145
    %v147 = vpop.f32.mrb[0].mxu0
    %148 = vmatprep.mubr.f32.mxu0 0.0
    %149 = vmatmul.mubr.f32.gmra.mrb[0].mxu0 %v66
    %v150 = vpop.f32.mrb[0].mxu0
    %v151 = vadd.f32 %v51, %v150
    %v152 = vpop.f32.mrb[0].mxu0
    %153 = vmatprep.mubr.f32.mxu0 0.0
    %154 = vmatmul.mubr.f32.gmra.mrb[0].mxu0 %v69
    %v155 = vpop.f32.mrb[0].mxu0
    %v156 = vadd.f32 %v56, %v155
    %v157 = vpop.f32.mrb[0].mxu0
    %158 = vdwg.mxu0
    %v159 = vmax.f32 %v141, 0.0
    %v160 = vmax.f32 %v146, 0.0
    %v161 = vmax.f32 %v151, 0.0
    %v162 = vmax.f32 %v156, 0.0
    %v163 = vld [vmem:[%s3] sm:$0xff]
    %v164 = vld [vmem:[%s3 + $0x8] sm:$0xff]
    %v165 = vld [vmem:[%s3 + $0x10] sm:$0xff]
    %v166 = vld [vmem:[%s3 + $0x18] sm:$0xff]
    %v167 = vld [vmem:[%s4] sm:$0xff]
    %v168 = vld [vmem:[%s4 + $0x8] sm:$0xff]
    %v169 = vld [vmem:[%s4 + $0x10] sm:$0xff]
    %v170 = vld [vmem:[%s4 + $0x18] sm:$0xff]
    %172 = vset.pattern.permute.xlu0 0
    %173 = vperm.xlu0 %172, %v167
    %v174 = vpop.permute.xlu0 %173
    %177 = vset.pattern.permute.xlu0 0
    %178 = vperm.xlu0 %177, %v168
    %v179 = vpop.permute.xlu0 %178
    %182 = vset.pattern.permute.xlu0 0
    %183 = vperm.xlu0 %182, %v169
    %v184 = vpop.permute.xlu0 %183
    %187 = vset.pattern.permute.xlu0 0
    %188 = vperm.xlu0 %187, %v170
    %v189 = vpop.permute.xlu0 %188
    %vm191 = vcmask 261120
    %v193 = vsel %vm191, %v163, 0
    %v196 = vsel %vm191, %v164, 0
    %v199 = vsel %vm191, %v165, 0
    %v202 = vsel %vm191, %v166, 0
    %204 = vmatprep.subr.mxu0 0.0
    %205 = vmatpush1.msra.mxu0 %v159
    %206 = vmatprep.subr.mxu0 0.0
    %207 = vmatpush1.msra.mxu0 %v160
    %208 = vmatprep.subr.mxu0 0.0
    %209 = vmatpush1.msra.mxu0 %v161
    %210 = vmatprep.subr.mxu0 0.0
    %211 = vmatpush1.msra.mxu0 %v162
    %212 = vmatprep.subr.mxu0 0.0
    %213 = vmatpush1.msra.mxu0 0.0
    %214 = vmatprep.subr.mxu0 0.0
    %215 = vmatpush1.msra.mxu0 0.0
    %216 = vmatprep.subr.mxu0 0.0
    %217 = vmatpush1.msra.mxu0 0.0
    %218 = vmatprep.subr.mxu0 0.0
    %219 = vmatpush1.msra.mxu0 0.0
    %220 = vmatprep.subr.mxu0 0.0
    %221 = vmatpush1.msra.mxu0 0.0
    %222 = vmatprep.subr.mxu0 0.0
    %223 = vmatpush1.msra.mxu0 0.0
    %224 = vmatprep.subr.mxu0 0.0
    %225 = vmatpush1.msra.mxu0 0.0
    %226 = vmatprep.subr.mxu0 0.0
    %227 = vmatpush1.msra.mxu0 0.0
    %228 = vmatprep.subr.mxu0 0.0
    %229 = vmatpush1.msra.mxu0 0.0
    %230 = vmatprep.subr.mxu0 0.0
    %231 = vmatpush1.msra.mxu0 0.0
    %232 = vmatprep.subr.mxu0 0.0
    %233 = vmatpush1.msra.mxu0 0.0
    %234 = vmatprep.subr.mxu0 0.0
    %235 = vmatpush1.msra.mxu0 0.0
    %236 = vmatprep.subr.mxu0 0.0
    %237 = vmatpush1.msra.mxu0 0.0
    %238 = vmatprep.subr.mxu0 0.0
    %239 = vmatpush1.msra.mxu0 0.0
    %240 = vmatprep.subr.mxu0 0.0
    %241 = vmatpush1.msra.mxu0 0.0
    %242 = vmatprep.subr.mxu0 0.0
    %243 = vmatpush1.msra.mxu0 0.0
    %244 = vmatprep.subr.mxu0 0.0
    %245 = vmatpush1.msra.mxu0 0.0
    %246 = vmatprep.subr.mxu0 0.0
    %247 = vmatpush1.msra.mxu0 0.0
    %248 = vmatprep.subr.mxu0 0.0
    %249 = vmatpush1.msra.mxu0 0.0
    %250 = vmatprep.subr.mxu0 0.0
    %251 = vmatpush1.msra.mxu0 0.0
    %252 = vmatprep.subr.mxu0 0.0
    %253 = vmatpush1.msra.mxu0 0.0
    %254 = vmatprep.subr.mxu0 0.0
    %255 = vmatpush1.msra.mxu0 0.0
    %256 = vmatprep.subr.mxu0 0.0
    %257 = vmatpush1.msra.mxu0 0.0
    %258 = vmatprep.subr.mxu0 0.0
    %259 = vmatpush1.msra.mxu0 0.0
    %260 = vmatprep.subr.mxu0 0.0
    %261 = vmatpush1.msra.mxu0 0.0
    %262 = vmatprep.subr.mxu0 0.0
    %263 = vmatpush1.msra.mxu0 0.0
    %264 = vmatprep.subr.mxu0 0.0
    %265 = vmatpush1.msra.mxu0 0.0
    %266 = vmatprep.subr.mxu0 0.0
    %267 = vmatpush1.msra.mxu0 0.0
    %268 = vmatprep.mubr.f32.mxu0 0.0
    %269 = vmatmul.mubr.f32.gmra.mrb[0].mxu0 %v193
    %v270 = vpop.f32.mrb[0].mxu0
    %v271 = vadd.f32 %v174, %v270
    %v272 = vpop.f32.mrb[0].mxu0
    %273 = vmatprep.mubr.f32.mxu0 0.0
    %274 = vmatmul.mubr.f32.gmra.mrb[0].mxu0 %v196
    %v275 = vpop.f32.mrb[0].mxu0
    %v276 = vadd.f32 %v179, %v275
    %v277 = vpop.f32.mrb[0].mxu0
    %278 = vmatprep.mubr.f32.mxu0 0.0
    %279 = vmatmul.mubr.f32.gmra.mrb[0].mxu0 %v199
    %v280 = vpop.f32.mrb[0].mxu0
    %v281 = vadd.f32 %v184, %v280
    %v282 = vpop.f32.mrb[0].mxu0
    %283 = vmatprep.mubr.f32.mxu0 0.0
    %284 = vmatmul.mubr.f32.gmra.mrb[0].mxu0 %v202
    %v285 = vpop.f32.mrb[0].mxu0
    %v286 = vadd.f32 %v189, %v285
    %v287 = vpop.f32.mrb[0].mxu0
    %288 = vdwg.mxu0
    %v289 = vmax.f32 %v271, 0.0
    %v290 = vmax.f32 %v276, 0.0
    %v291 = vmax.f32 %v281, 0.0
    %v292 = vmax.f32 %v286, 0.0
    %v293 = vld [vmem:[%s5] sm:$0xff]
    %v294 = vld [vmem:[%s5 + $0x8] sm:$0xff]
    %v295 = vld [vmem:[%s5 + $0x10] sm:$0xff]
    %v296 = vld [vmem:[%s5 + $0x18] sm:$0xff]
    %298 = vset.pattern.permute.xlu0 0
    %299 = vperm.xlu0 %298, %v293
    %v300 = vpop.permute.xlu0 %299
    %303 = vset.pattern.permute.xlu0 0
    %304 = vperm.xlu0 %303, %v294
    %v305 = vpop.permute.xlu0 %304
    %308 = vset.pattern.permute.xlu0 0
    %309 = vperm.xlu0 %308, %v295
    %v310 = vpop.permute.xlu0 %309
    %313 = vset.pattern.permute.xlu0 0
    %314 = vperm.xlu0 %313, %v296
    %v315 = vpop.permute.xlu0 %314
    %v317 = vmul.f32 %v289, %v300
    %v318 = vmul.f32 %v290, %v305
    %v319 = vmul.f32 %v291, %v310
    %v320 = vmul.f32 %v292, %v315
    %vm321 = vcmask 64512
    %v322 = vsel %vm321, %v317, 0.0
    %v323 = vsel %vm321, %v318, 0.0
    %v324 = vadd.f32 %v322, %v323
    %v325 = vsel %vm321, %v319, 0.0
    %v326 = vadd.f32 %v324, %v325
    %v327 = vsel %vm321, %v320, 0.0
    %v328 = vadd.f32 %v326, %v327
    %v329 = vrot.slane %v328, 4
    %v330 = vadd.f32 %v328, %v329
    %v331 = vrot.slane %v330, 2
    %v332 = vadd.f32 %v330, %v331
    %v333 = vrot.slane %v332, 1
    %v334 = vadd.f32 %v332, %v333
    %v335 = vld [vmem:[#allocation2] sm:$0x1]
    %337 = vset.pattern.permute.xlu0 0
    %338 = vperm.xlu0 %337, %v335
    %v339 = vpop.permute.xlu0 %338
    %v341 = vlaneseq
    %v342 = vshrl.u32 %v341, 7
    %v343 = vsub.s32 0, %v342
    %v344 = vrot.slane %v339, %v343
    %v345 = vadd.f32 %v334, %v344
    %vm346 = vcmask 57344
    %347 = vst.msk [vmem:[#allocation3] sm:$0x1] %vm346, %v345
    // Predicated region
    $region30: #{value_network_forward.1} parent=1 // pred_check
      _
    $region31: #{value_network_forward.1} parent=1 // pred_check_branch
      %349 = sbr.rel (0) target = $region33
    $region32: #{value_network_forward.1} parent=1 // pred_region
      %s351 = ssub.s32 16, 16
      %352 = vsyncadd [#allocation4], %s351
      %s354 = sshll.u32 [#allocation3], 4
      %s355 = int_to_ptr.vmem [resolvable:$true] %s354
      %357 = dma.vmem_to_hbm [thread:$0]  %s355, 16, %s7, [#allocation4]
    $region33: #{value_network_forward.1} parent=1 // pred_fallthru
      _
    // Predicated region
    $region34: #{value_network_forward.1} parent=1 // pred_check
      _
    $region35: #{value_network_forward.1} parent=1 // pred_check_branch
      %359 = sbr.rel (0) target = $region37
    $region36: #{value_network_forward.1} parent=1 // pred_region
      %360 = dma.done [#allocation4], 16
    $region37: #{value_network_forward.1} parent=1 // pred_fallthru
      _
    %361 = vsyncpa [#allocation4], 1

</llo_original>
